<compile_context>
chip_gen: v7x
topology: tpu7x:2x2x1
jax: 0.10.0
libtpu: 0.0.40
codegen_flags: <defaults>
</compile_context>

<pallas_src>
import jax
import jax.numpy as jnp
import numpy as np
from jax.experimental import pallas as pl
from jax.experimental.pallas import tpu as pltpu


def calculate_laplacian_with_self_loop(matrix):
    n = matrix.shape[0]
    matrix = matrix + jnp.eye(n, dtype=matrix.dtype)
    row_sum = matrix.sum(1)
    d_inv_sqrt = jnp.power(row_sum, -0.5)
    d_inv_sqrt = jnp.where(jnp.isinf(d_inv_sqrt), 0.0, d_inv_sqrt)
    d_mat_inv_sqrt = jnp.diag(d_inv_sqrt)
    return (matrix @ d_mat_inv_sqrt).T @ d_mat_inv_sqrt


def _xavier_uniform(key, fan_in, fan_out):
    bound = (6.0 / (fan_in + fan_out)) ** 0.5
    return jax.random.uniform(
        key, (fan_in, fan_out), dtype=jnp.float32, minval=-bound, maxval=bound
    )


# ---------------- fused Pallas kernel (single grid step, all operands in VMEM) ----------------

def _make_tgcn_kernel(BN, D, H, offs_a, offs_b):
    """Build the kernel closure over static shapes and packed-parameter row offsets."""
    o_lap, o_sel_lo, o_sel_hi, o_w2x, o_w2h, o_b2 = offs_a
    o_w1, o_b1 = offs_b
    DH = D + H

    def kernel(xh_ref, h_ref, pa_ref, pb_ref, out_ref):
        f32 = jnp.float32
        dot = lambda a, b: jnp.dot(a, b, preferred_element_type=f32)

        # Runtime data (batch already folded into rows wrapper-side).
        xh = xh_ref[...]                                   # (BN, D+H) = [x | h]
        h = h_ref[...]                                     # (BN, H)

        # Packed parameters: static, 8-row-aligned ref slices (no loads until used).
        lap = pa_ref[o_lap:o_lap + BN, :BN]                # block-diag laplacian (BN, BN)
        sel_lo = pa_ref[o_sel_lo:o_sel_lo + 2 * BN, :BN]   # chunk-quirk selectors (2BN, BN)
        sel_hi = pa_ref[o_sel_hi:o_sel_hi + 2 * BN, :BN]
        w2x = pa_ref[o_w2x:o_w2x + DH, :H]                 # w2 x-rows, zero h-rows (D+H, H)
        w2h = pa_ref[o_w2h:o_w2h + H, :H]                  # (H, H)
        b2 = pa_ref[o_b2:o_b2 + 1, :H]                     # (1, H)
        w1 = pb_ref[o_w1:o_w1 + DH, :]                     # (D+H, 2H)
        b1 = pb_ref[o_b1:o_b1 + 1, :]                      # (1, 2H)

        # graph_conv1 + sigmoid:  L @ [x|h]  then  (.) @ w1  (2 matmuls total).
        lxh = dot(lap, xh)                                 # (BN, D+H) = [L@x | L@h], reused below
        g1 = jax.nn.sigmoid(dot(lxh, w1) + b1)             # (BN, 2H)

        # torch.chunk(dim=1) flat-layout quirk (faithful to the reference):
        # r row (b*N+n) = g1[b*N + n//2, (n%2)*H:(n%2+1)*H]
        # u row (b*N+n) = g1[b*N + N/2 + n//2, (n%2)*H:(n%2+1)*H]
        # realized as two block-diagonal 0/1 selection matmuls -> [r; u] stacked on sublanes.
        g1_lo = g1[:, :H]
        g1_hi = g1[:, H:]
        ru = dot(sel_lo, g1_lo) + dot(sel_hi, g1_hi)       # (2BN, H)
        r = ru[:BN]                                        # 8-aligned sublane slices
        u = ru[BN:]

        # graph_conv2 + tanh, reusing L@x through the zero-padded w2x (no lane slice).
        lrh = dot(lap, r * h)                              # (BN, H) = L @ (r*h)
        c = jnp.tanh(dot(lxh, w2x) + dot(lrh, w2h) + b2)   # (BN, H)

        # GRU gate update (single full-block store).
        out_ref[...] = u * h + (1.0 - u) * c

    return kernel


# ---------------- wrapper-side layout glue ----------------

def _chunk_selectors(B, N):
    """Block-diagonal 0/1 matrices realizing the torch.chunk flat-layout quirk."""
    BN, half = B * N, N // 2
    sel_lo = np.zeros((2 * BN, BN), np.float32)
    sel_hi = np.zeros((2 * BN, BN), np.float32)
    for b in range(B):
        for n in range(N):
            src_r = b * N + n // 2
            src_u = b * N + half + n // 2
            dst_r = b * N + n
            dst_u = BN + b * N + n
            tgt = sel_lo if n % 2 == 0 else sel_hi
            tgt[dst_r, src_r] = 1.0
            tgt[dst_u, src_u] = 1.0
    return jnp.asarray(sel_lo), jnp.asarray(sel_hi)


def _pack_rows(blocks, width):
    """Stack 2-D blocks along rows at 8-aligned offsets, zero-padded to `width` cols."""
    offs, parts, row = [], [], 0
    for blk in blocks:
        offs.append(row)
        r, c = blk.shape
        r8 = -(-r // 8) * 8
        parts.append(jnp.pad(blk, ((0, r8 - r), (0, width - c))))
        row += r8
    return jnp.concatenate(parts, axis=0), offs


def tgcn_cell_forward(inputs, hidden_flat, laplacian, w1, b1, w2, b2):
    """inputs: (B, N, D) f32; hidden_flat: (B, N*H) f32 -> (new_h, new_h)."""
    B, N, D = inputs.shape
    H = w2.shape[1]
    if N % 2 != 0:
        raise ValueError("num_nodes must be even (torch.chunk split point)")
    BN = B * N

    # Fold batch into matmul rows (sublanes); all glue below is trace-time / free XLA work.
    hidden = hidden_flat.reshape(B, N, H)
    xh = jnp.concatenate([inputs, hidden], axis=2).reshape(BN, D + H)   # (BN, D+H)
    h2 = hidden.reshape(BN, H)                                          # (BN, H)

    lap_bd = jnp.kron(jnp.eye(B, dtype=laplacian.dtype), laplacian)     # (BN, BN)
    sel_lo, sel_hi = _chunk_selectors(B, N)                             # (2BN, BN) each

    # conv2 weights: x-part zero-padded over the h-columns of lxh (so L@x is reused
    # without a lane slice or a second laplacian matmul), h-part separate.
    w2x_pad = jnp.concatenate([w2[:D], jnp.zeros((H, H), w2.dtype)], axis=0)  # (D+H, H)
    w2h = w2[D:]                                                              # (H, H)
    b2_r = b2.reshape(1, H)
    b1_r = b1.reshape(1, 2 * H)

    # Pack parameters into two operands (cuts input DMA descriptors 14 -> 4).
    wide_a = max(BN, H)
    pa, offs_a = _pack_rows([lap_bd, sel_lo, sel_hi, w2x_pad, w2h, b2_r], wide_a)
    pb, offs_b = _pack_rows([w1, b1_r], 2 * H)

    kernel = _make_tgcn_kernel(BN, D, H, offs_a, offs_b)
    vmem = pl.BlockSpec(memory_space=pltpu.MemorySpace.VMEM)
    # TODO(synk): if B (or a fused time unroll) grows, move batch blocks onto a
    # grid axis with dimension_semantics=("parallel",) so v7x's 2 TensorCores share it,
    # and present a lane-dense (>=128-wide) output slab once N*H grows.
    new_h = pl.pallas_call(
        kernel,
        out_shape=jax.ShapeDtypeStruct((BN, H), jnp.float32),
        in_specs=[vmem] * 4,
        out_specs=vmem,
    )(xh, h2, pa, pb)

    new_h_flat = new_h.reshape(B, N * H)   # contiguous -> free
    return new_h_flat, new_h_flat


# ---------------- pure-JAX reference (direct port of the PyTorch math) ----------------

def _reference_forward(inputs, hidden_flat, laplacian, w1, b1, w2, b2):
    B, N, D = inputs.shape
    hp = jax.lax.Precision.HIGHEST

    def graph_conv(x, h_flat, w, bias):
        h = h_flat.reshape(B, N, -1)
        cat = jnp.concatenate([x, h], axis=2)                          # (B, N, F)
        ax = jnp.einsum("nm,bmf->bnf", laplacian, cat, precision=hp)   # (B, N, F)
        out = jnp.einsum("bnf,fo->bno", ax, w, precision=hp) + bias    # (B, N, O)
        return out.reshape(B, -1)

    g1 = jax.nn.sigmoid(graph_conv(inputs, hidden_flat, w1, b1))       # (B, N*2H)
    r, u = jnp.split(g1, 2, axis=1)
    c = jnp.tanh(graph_conv(inputs, r * hidden_flat, w2, b2))          # (B, N*H)
    return u * hidden_flat + (1.0 - u) * c


if __name__ == "__main__":
    # Small deterministic shapes: batch=2, num_nodes=16, node_dim=4, hidden_dim=32
    B, N, D, H = 2, 16, 4, 32

    key = jax.random.PRNGKey(0)
    k_adj, k_x, k_h, k_w1, k_w2 = jax.random.split(key, 5)

    # Deterministic synthetic adjacency and its normalized laplacian (buffer).
    adj = jax.random.uniform(k_adj, (N, N), dtype=jnp.float32)
    adj = 0.5 * (adj + adj.T)
    laplacian = calculate_laplacian_with_self_loop(adj)

    # Parameters (xavier_uniform weights; bias=1.0 for conv1, 0.0 for conv2).
    w1 = _xavier_uniform(k_w1, D + H, 2 * H)
    b1 = jnp.full((2 * H,), 1.0, dtype=jnp.float32)
    w2 = _xavier_uniform(k_w2, D + H, H)
    b2 = jnp.zeros((H,), dtype=jnp.float32)

    inputs = jax.random.normal(k_x, (B, N, D), dtype=jnp.float32)
    hidden0 = jax.random.normal(k_h, (B, N * H), dtype=jnp.float32)

    fwd = jax.jit(tgcn_cell_forward)
    new_h, out = fwd(inputs, hidden0, laplacian, w1, b1, w2, b2)
    jax.block_until_ready(new_h)

    assert new_h.shape == (B, N * H)
    assert out.shape == (B, N * H)

    ref = _reference_forward(inputs, hidden0, laplacian, w1, b1, w2, b2)
    max_err = float(jnp.max(jnp.abs(new_h - ref)))
    assert jnp.allclose(new_h, ref, atol=2e-3, rtol=2e-3), max_err
    print("KERNEL_OK")
</pallas_src>

<mosaic_0001>
module attributes {stable_mosaic.version = 11 : i64} {
  func.func @kernel(%arg0: memref<32x36xf32, #tpu.memory_space<vmem>>, %arg1: memref<32x32xf32, #tpu.memory_space<vmem>>, %arg2: memref<240x32xf32, #tpu.memory_space<vmem>>, %arg3: memref<48x64xf32, #tpu.memory_space<vmem>>, %arg4: memref<32x32xf32, #tpu.memory_space<vmem>>) attributes {dimension_semantics = [], scalar_prefetch = 0 : i64, scratch_operands = 0 : i64, tpu.core_type = #tpu.core_type<tc>} {
    %c0 = arith.constant 0 : index
    %c0_0 = arith.constant 0 : index
    %0 = vector.load %arg0[%c0, %c0_0] : memref<32x36xf32, #tpu.memory_space<vmem>>, vector<32x36xf32>
    %c0_1 = arith.constant 0 : index
    %c0_2 = arith.constant 0 : index
    %1 = vector.load %arg1[%c0_1, %c0_2] : memref<32x32xf32, #tpu.memory_space<vmem>>, vector<32x32xf32>
    %c0_3 = arith.constant 0 : index
    %c0_4 = arith.constant 0 : index
    %2 = vector.load %arg2[%c0_3, %c0_4] : memref<240x32xf32, #tpu.memory_space<vmem>>, vector<32x32xf32>
    %c32 = arith.constant 32 : index
    %c0_5 = arith.constant 0 : index
    %3 = vector.load %arg2[%c32, %c0_5] : memref<240x32xf32, #tpu.memory_space<vmem>>, vector<64x32xf32>
    %c96 = arith.constant 96 : index
    %c0_6 = arith.constant 0 : index
    %4 = vector.load %arg2[%c96, %c0_6] : memref<240x32xf32, #tpu.memory_space<vmem>>, vector<64x32xf32>
    %c160 = arith.constant 160 : index
    %c0_7 = arith.constant 0 : index
    %5 = vector.load %arg2[%c160, %c0_7] : memref<240x32xf32, #tpu.memory_space<vmem>>, vector<36x32xf32>
    %c200 = arith.constant 200 : index
    %c0_8 = arith.constant 0 : index
    %6 = vector.load %arg2[%c200, %c0_8] : memref<240x32xf32, #tpu.memory_space<vmem>>, vector<32x32xf32>
    %c232 = arith.constant 232 : index
    %c0_9 = arith.constant 0 : index
    %7 = vector.load %arg2[%c232, %c0_9] : memref<240x32xf32, #tpu.memory_space<vmem>>, vector<1x32xf32>
    %c0_10 = arith.constant 0 : index
    %c0_11 = arith.constant 0 : index
    %8 = vector.load %arg3[%c0_10, %c0_11] : memref<48x64xf32, #tpu.memory_space<vmem>>, vector<36x64xf32>
    %c40 = arith.constant 40 : index
    %c0_12 = arith.constant 0 : index
    %9 = vector.load %arg3[%c40, %c0_12] : memref<48x64xf32, #tpu.memory_space<vmem>>, vector<1x64xf32>
    %cst = arith.constant dense<0.000000e+00> : vector<32x36xf32>
    %10 = tpu.matmul %2, %0, %cst {dimension_numbers = #tpu.dot_dimension_numbers<[1], [0], [0], [1], [0, 0, 1, 1], [], []>} : vector<32x32xf32>, vector<32x36xf32>, vector<32x36xf32> -> vector<32x36xf32>
    %cst_13 = arith.constant dense<0.000000e+00> : vector<32x64xf32>
    %11 = tpu.matmul %10, %8, %cst_13 {dimension_numbers = #tpu.dot_dimension_numbers<[1], [0], [0], [1], [0, 0, 1, 1], [], []>} : vector<32x36xf32>, vector<36x64xf32>, vector<32x64xf32> -> vector<32x64xf32>
    %12 = vector.broadcast %9 : vector<1x64xf32> to vector<32x64xf32>
    %13 = arith.addf %11, %12 : vector<32x64xf32>
    %14 = arith.negf %13 : vector<32x64xf32>
    %15 = math.exp %14 : vector<32x64xf32>
    %cst_14 = arith.constant 1.000000e+00 : f32
    %16 = vector.broadcast %cst_14 : f32 to vector<32x64xf32>
    %17 = arith.addf %16, %15 : vector<32x64xf32>
    %18 = arith.divf %16, %17 : vector<32x64xf32>
    %19 = vector.extract_strided_slice %18 {offsets = [0, 0], sizes = [32, 32], strides = [1, 1]} : vector<32x64xf32> to vector<32x32xf32>
    %20 = vector.extract_strided_slice %18 {offsets = [0, 32], sizes = [32, 32], strides = [1, 1]} : vector<32x64xf32> to vector<32x32xf32>
    %cst_15 = arith.constant dense<0.000000e+00> : vector<64x32xf32>
    %21 = tpu.matmul %3, %19, %cst_15 {dimension_numbers = #tpu.dot_dimension_numbers<[1], [0], [0], [1], [0, 0, 1, 1], [], []>} : vector<64x32xf32>, vector<32x32xf32>, vector<64x32xf32> -> vector<64x32xf32>
    %cst_16 = arith.constant dense<0.000000e+00> : vector<64x32xf32>
    %22 = tpu.matmul %4, %20, %cst_16 {dimension_numbers = #tpu.dot_dimension_numbers<[1], [0], [0], [1], [0, 0, 1, 1], [], []>} : vector<64x32xf32>, vector<32x32xf32>, vector<64x32xf32> -> vector<64x32xf32>
    %23 = arith.addf %21, %22 : vector<64x32xf32>
    %24 = vector.extract_strided_slice %23 {offsets = [0, 0], sizes = [32, 32], strides = [1, 1]} : vector<64x32xf32> to vector<32x32xf32>
    %25 = vector.extract_strided_slice %23 {offsets = [32, 0], sizes = [32, 32], strides = [1, 1]} : vector<64x32xf32> to vector<32x32xf32>
    %26 = arith.mulf %24, %1 : vector<32x32xf32>
    %cst_17 = arith.constant dense<0.000000e+00> : vector<32x32xf32>
    %27 = tpu.matmul %2, %26, %cst_17 {dimension_numbers = #tpu.dot_dimension_numbers<[1], [0], [0], [1], [0, 0, 1, 1], [], []>} : vector<32x32xf32>, vector<32x32xf32>, vector<32x32xf32> -> vector<32x32xf32>
    %cst_18 = arith.constant dense<0.000000e+00> : vector<32x32xf32>
    %28 = tpu.matmul %10, %5, %cst_18 {dimension_numbers = #tpu.dot_dimension_numbers<[1], [0], [0], [1], [0, 0, 1, 1], [], []>} : vector<32x36xf32>, vector<36x32xf32>, vector<32x32xf32> -> vector<32x32xf32>
    %cst_19 = arith.constant dense<0.000000e+00> : vector<32x32xf32>
    %29 = tpu.matmul %27, %6, %cst_19 {dimension_numbers = #tpu.dot_dimension_numbers<[1], [0], [0], [1], [0, 0, 1, 1], [], []>} : vector<32x32xf32>, vector<32x32xf32>, vector<32x32xf32> -> vector<32x32xf32>
    %30 = arith.addf %28, %29 : vector<32x32xf32>
    %31 = vector.broadcast %7 : vector<1x32xf32> to vector<32x32xf32>
    %32 = arith.addf %30, %31 : vector<32x32xf32>
    %33 = math.tanh %32 : vector<32x32xf32>
    %34 = arith.mulf %25, %1 : vector<32x32xf32>
    %cst_20 = arith.constant 1.000000e+00 : f32
    %35 = vector.broadcast %cst_20 : f32 to vector<32x32xf32>
    %36 = arith.subf %35, %25 : vector<32x32xf32>
    %37 = arith.mulf %36, %33 : vector<32x32xf32>
    %38 = arith.addf %34, %37 : vector<32x32xf32>
    %c0_21 = arith.constant 0 : index
    %c0_22 = arith.constant 0 : index
    %39 = vector.load %arg4[%c0_21, %c0_22] : memref<32x32xf32, #tpu.memory_space<vmem>>, vector<32x32xf32>
    tpu.vector_store %arg4[%c0_21, %c0_22], %38 {strides = array<i32>} : memref<32x32xf32, #tpu.memory_space<vmem>>, vector<32x32xf32>,
    return
  }
}

</mosaic_0001>

<llo_original>
// kernel: tgcn_cell_forward.1
$region0: #{tgcn_cell_forward.1}
  #allocation0 [shape = 'u32[]', space=smem, size = 0x4, offset = 0x4, fixed_abs, tag = 'smem constant byte address 0x4 - core index']
  #allocation1 [shape = 'u32[144,128]{1,0:T(1,128)}', space=vmem, size = 0x12000, scoped, tag = 'internal scratch']
  %s0 = inlined_call_operand.vmem [shape: f32[32,36], index: 0, kind: input, shape index: {}]
  %s1 = inlined_call_operand.vmem [shape: f32[32,32], index: 1, kind: input, shape index: {}]
  %s2 = inlined_call_operand.vmem [shape: f32[240,32], index: 2, kind: input, shape index: {}]
  %s3 = inlined_call_operand.vmem [shape: f32[48,64], index: 3, kind: input, shape index: {}]
  %s4 = inlined_call_operand.vmem [shape: f32[32,32], index: 4, kind: output, shape index: {}]
  %s5 = sld [smem:[#allocation0]]
  $region26: #{tgcn_cell_forward.1} parent=0
    _
  %s7 = ssub.s32 1, %s5
  %s8 = scalar_select 0, %s7, %s5
  // Predicated region
  $region2: #{tgcn_cell_forward.1} parent=0 // pred_check
    _
  $region3: #{tgcn_cell_forward.1} parent=0 // pred_check_branch
    %10 = sbr.rel (0) target = $region5
  $region4: #{tgcn_cell_forward.1} parent=0 // pred_region
    _
  $region5: #{tgcn_cell_forward.1} parent=0 // pred_fallthru
    _
  // Predicated region
  $region6: #{tgcn_cell_forward.1} parent=0 // pred_check
    _
  $region7: #{tgcn_cell_forward.1} parent=0 // pred_check_branch
    %12 = sbr.rel (0) target = $region9
  $region8: #{tgcn_cell_forward.1} parent=0 // pred_region
    _
  $region9: #{tgcn_cell_forward.1} parent=0 // pred_fallthru
    _
  // Predicated region
  $region10: #{tgcn_cell_forward.1} parent=0 // pred_check
    _
  $region11: #{tgcn_cell_forward.1} parent=0 // pred_check_branch
    %14 = sbr.rel (0) target = $region13
  $region12: #{tgcn_cell_forward.1} parent=0 // pred_region
    _
  $region13: #{tgcn_cell_forward.1} parent=0 // pred_fallthru
    _
  // Predicated region
  $region14: #{tgcn_cell_forward.1} parent=0 // pred_check
    _
  $region15: #{tgcn_cell_forward.1} parent=0 // pred_check_branch
    %16 = sbr.rel (0) target = $region17
  $region16: #{tgcn_cell_forward.1} parent=0 // pred_region
    _
  $region17: #{tgcn_cell_forward.1} parent=0 // pred_fallthru
    _
  %v17 = vld [vmem:[%s0] sm:$0xff]
  %v18 = vld [vmem:[%s0 + $0x8] sm:$0xff]
  %v19 = vld [vmem:[%s0 + $0x10] sm:$0xff]
  %v20 = vld [vmem:[%s0 + $0x18] sm:$0xff]
  %v21 = vld [vmem:[%s1] sm:$0xff]
  %v22 = vld [vmem:[%s1 + $0x8] sm:$0xff]
  %v23 = vld [vmem:[%s1 + $0x10] sm:$0xff]
  %v24 = vld [vmem:[%s1 + $0x18] sm:$0xff]
  %v25 = vld [vmem:[%s2] sm:$0xff]
  %v26 = vld [vmem:[%s2 + $0x8] sm:$0xff]
  %v27 = vld [vmem:[%s2 + $0x10] sm:$0xff]
  %v28 = vld [vmem:[%s2 + $0x18] sm:$0xff]
  %v29 = vld [vmem:[%s2 + $0x20] sm:$0xff]
  %v30 = vld [vmem:[%s2 + $0x28] sm:$0xff]
  %v31 = vld [vmem:[%s2 + $0x30] sm:$0xff]
  %v32 = vld [vmem:[%s2 + $0x38] sm:$0xff]
  %v33 = vld [vmem:[%s2 + $0x40] sm:$0xff]
  %v34 = vld [vmem:[%s2 + $0x48] sm:$0xff]
  %v35 = vld [vmem:[%s2 + $0x50] sm:$0xff]
  %v36 = vld [vmem:[%s2 + $0x58] sm:$0xff]
  %v37 = vld [vmem:[%s2 + $0x60] sm:$0xff]
  %v38 = vld [vmem:[%s2 + $0x68] sm:$0xff]
  %v39 = vld [vmem:[%s2 + $0x70] sm:$0xff]
  %v40 = vld [vmem:[%s2 + $0x78] sm:$0xff]
  %v41 = vld [vmem:[%s2 + $0x80] sm:$0xff]
  %v42 = vld [vmem:[%s2 + $0x88] sm:$0xff]
  %v43 = vld [vmem:[%s2 + $0x90] sm:$0xff]
  %v44 = vld [vmem:[%s2 + $0x98] sm:$0xff]
  %v45 = vld [vmem:[%s2 + $0xa0] sm:$0xff]
  %v46 = vld [vmem:[%s2 + $0xa8] sm:$0xff]
  %v47 = vld [vmem:[%s2 + $0xb0] sm:$0xff]
  %v48 = vld [vmem:[%s2 + $0xb8] sm:$0xff]
  %v49 = vld [vmem:[%s2 + $0xc0] sm:$0xf]
  %v50 = vld [vmem:[%s2 + $0xc8] sm:$0xff]
  %v51 = vld [vmem:[%s2 + $0xd0] sm:$0xff]
  %v52 = vld [vmem:[%s2 + $0xd8] sm:$0xff]
  %v53 = vld [vmem:[%s2 + $0xe0] sm:$0xff]
  %v54 = vld [vmem:[%s2 + $0xe8] sm:$0x1]
  %v55 = vld [vmem:[%s3] sm:$0xff]
  %v56 = vld [vmem:[%s3 + $0x8] sm:$0xff]
  %v57 = vld [vmem:[%s3 + $0x10] sm:$0xff]
  %v58 = vld [vmem:[%s3 + $0x18] sm:$0xff]
  %v59 = vld [vmem:[%s3 + $0x20] sm:$0xf]
  %v60 = vld [vmem:[%s3 + $0x28] sm:$0x1]
  %vm61 = vcmask 261120
  %v63 = vsel %vm61, %v25, 0
  %v66 = vsel %vm61, %v26, 0
  %v69 = vsel %vm61, %v27, 0
  %v72 = vsel %vm61, %v28, 0
  %74 = vmatprep.subr.mxu0 0.0
  %75 = vmatpush1.msra.mxu0 %v17
  %76 = vmatprep.subr.mxu0 0.0
  %77 = vmatpush1.msra.mxu0 %v18
  %78 = vmatprep.subr.mxu0 0.0
  %79 = vmatpush1.msra.mxu0 %v19
  %80 = vmatprep.subr.mxu0 0.0
  %81 = vmatpush1.msra.mxu0 %v20
  %82 = vmatprep.subr.mxu0 0.0
  %83 = vmatpush1.msra.mxu0 0.0
  %84 = vmatprep.subr.mxu0 0.0
  %85 = vmatpush1.msra.mxu0 0.0
  %86 = vmatprep.subr.mxu0 0.0
  %87 = vmatpush1.msra.mxu0 0.0
  %88 = vmatprep.subr.mxu0 0.0
  %89 = vmatpush1.msra.mxu0 0.0
  %90 = vmatprep.subr.mxu0 0.0
  %91 = vmatpush1.msra.mxu0 0.0
  %92 = vmatprep.subr.mxu0 0.0
  %93 = vmatpush1.msra.mxu0 0.0
  %94 = vmatprep.subr.mxu0 0.0
  %95 = vmatpush1.msra.mxu0 0.0
  %96 = vmatprep.subr.mxu0 0.0
  %97 = vmatpush1.msra.mxu0 0.0
  %98 = vmatprep.subr.mxu0 0.0
  %99 = vmatpush1.msra.mxu0 0.0
  %100 = vmatprep.subr.mxu0 0.0
  %101 = vmatpush1.msra.mxu0 0.0
  %102 = vmatprep.subr.mxu0 0.0
  %103 = vmatpush1.msra.mxu0 0.0
  %104 = vmatprep.subr.mxu0 0.0
  %105 = vmatpush1.msra.mxu0 0.0
  %106 = vmatprep.subr.mxu0 0.0
  %107 = vmatpush1.msra.mxu0 0.0
  %108 = vmatprep.subr.mxu0 0.0
  %109 = vmatpush1.msra.mxu0 0.0
  %110 = vmatprep.subr.mxu0 0.0
  %111 = vmatpush1.msra.mxu0 0.0
  %112 = vmatprep.subr.mxu0 0.0
  %113 = vmatpush1.msra.mxu0 0.0
  %114 = vmatprep.subr.mxu0 0.0
  %115 = vmatpush1.msra.mxu0 0.0
  %116 = vmatprep.subr.mxu0 0.0
  %117 = vmatpush1.msra.mxu0 0.0
  %118 = vmatprep.subr.mxu0 0.0
  %119 = vmatpush1.msra.mxu0 0.0
  %120 = vmatprep.subr.mxu0 0.0
  %121 = vmatpush1.msra.mxu0 0.0
  %122 = vmatprep.subr.mxu0 0.0
  %123 = vmatpush1.msra.mxu0 0.0
  %124 = vmatprep.subr.mxu0 0.0
  %125 = vmatpush1.msra.mxu0 0.0
  %126 = vmatprep.subr.mxu0 0.0
  %127 = vmatpush1.msra.mxu0 0.0
  %128 = vmatprep.subr.mxu0 0.0
  %129 = vmatpush1.msra.mxu0 0.0
  %130 = vmatprep.subr.mxu0 0.0
  %131 = vmatpush1.msra.mxu0 0.0
  %132 = vmatprep.subr.mxu0 0.0
  %133 = vmatpush1.msra.mxu0 0.0
  %134 = vmatprep.subr.mxu0 0.0
  %135 = vmatpush1.msra.mxu0 0.0
  %136 = vmatprep.subr.mxu0 0.0
  %137 = vmatpush1.msra.mxu0 0.0
  %138 = vmatprep.mubr.f32.mxu0 0.0
  %139 = vmatmul.mubr.f32.gmra.mrb[0].mxu0 %v63
  %v140 = vpop.f32.mrb[0].mxu0
  %v141 = vadd.f32 0.0, %v140
  %v142 = vpop.f32.mrb[0].mxu0
  %143 = vmatprep.mubr.f32.mxu0 0.0
  %144 = vmatmul.mubr.f32.gmra.mrb[0].mxu0 %v66
  %v145 = vpop.f32.mrb[0].mxu0
  %v146 = vadd.f32 0.0, %v145
  %v147 = vpop.f32.mrb[0].mxu0
  %148 = vmatprep.mubr.f32.mxu0 0.0
  %149 = vmatmul.mubr.f32.gmra.mrb[0].mxu0 %v69
  %v150 = vpop.f32.mrb[0].mxu0
  %v151 = vadd.f32 0.0, %v150
  %v152 = vpop.f32.mrb[0].mxu0
  %153 = vmatprep.mubr.f32.mxu0 0.0
  %154 = vmatmul.mubr.f32.gmra.mrb[0].mxu0 %v72
  %v155 = vpop.f32.mrb[0].mxu0
  %v156 = vadd.f32 0.0, %v155
  %v157 = vpop.f32.mrb[0].mxu0
  %158 = vdwg.mxu0
  %v159 = vlaneseq
  %v160 = vshrl.u32 %v159, 7
  %v161 = vsub.s32 0, %v160
  %v162 = vrot.slane %v60, %v161
  %vm163 = vcmask 293888
  %v165 = vsel %vm163, %v141, 0
  %v168 = vsel %vm163, %v146, 0
  %v171 = vsel %vm163, %v151, 0
  %v174 = vsel %vm163, %v156, 0
  %vm176 = vcmask 1043456
  %v178 = vsel %vm176, %v59, 0
  %180 = vmatprep.subr.mxu0 0.0
  %181 = vmatpush1.msra.mxu0 %v55
  %182 = vmatprep.subr.mxu0 0.0
  %183 = vmatpush1.msra.mxu0 %v56
  %184 = vmatprep.subr.mxu0 0.0
  %185 = vmatpush1.msra.mxu0 %v57
  %186 = vmatprep.subr.mxu0 0.0
  %187 = vmatpush1.msra.mxu0 %v58
  %188 = vmatprep.subr.mxu0 0.0
  %189 = vmatpush1.msra.mxu0 %v178
  %190 = vmatprep.subr.mxu0 0.0
  %191 = vmatpush1.msra.mxu0 0.0
  %192 = vmatprep.subr.mxu0 0.0
  %193 = vmatpush1.msra.mxu0 0.0
  %194 = vmatprep.subr.mxu0 0.0
  %195 = vmatpush1.msra.mxu0 0.0
  %196 = vmatprep.subr.mxu0 0.0
  %197 = vmatpush1.msra.mxu0 0.0
  %198 = vmatprep.subr.mxu0 0.0
  %199 = vmatpush1.msra.mxu0 0.0
  %200 = vmatprep.subr.mxu0 0.0
  %201 = vmatpush1.msra.mxu0 0.0
  %202 = vmatprep.subr.mxu0 0.0
  %203 = vmatpush1.msra.mxu0 0.0
  %204 = vmatprep.subr.mxu0 0.0
  %205 = vmatpush1.msra.mxu0 0.0
  %206 = vmatprep.subr.mxu0 0.0
  %207 = vmatpush1.msra.mxu0 0.0
  %208 = vmatprep.subr.mxu0 0.0
  %209 = vmatpush1.msra.mxu0 0.0
  %210 = vmatprep.subr.mxu0 0.0
  %211 = vmatpush1.msra.mxu0 0.0
  %212 = vmatprep.subr.mxu0 0.0
  %213 = vmatpush1.msra.mxu0 0.0
  %214 = vmatprep.subr.mxu0 0.0
  %215 = vmatpush1.msra.mxu0 0.0
  %216 = vmatprep.subr.mxu0 0.0
  %217 = vmatpush1.msra.mxu0 0.0
  %218 = vmatprep.subr.mxu0 0.0
  %219 = vmatpush1.msra.mxu0 0.0
  %220 = vmatprep.subr.mxu0 0.0
  %221 = vmatpush1.msra.mxu0 0.0
  %222 = vmatprep.subr.mxu0 0.0
  %223 = vmatpush1.msra.mxu0 0.0
  %224 = vmatprep.subr.mxu0 0.0
  %225 = vmatpush1.msra.mxu0 0.0
  %226 = vmatprep.subr.mxu0 0.0
  %227 = vmatpush1.msra.mxu0 0.0
  %228 = vmatprep.subr.mxu0 0.0
  %229 = vmatpush1.msra.mxu0 0.0
  %230 = vmatprep.subr.mxu0 0.0
  %231 = vmatpush1.msra.mxu0 0.0
  %232 = vmatprep.subr.mxu0 0.0
  %233 = vmatpush1.msra.mxu0 0.0
  %234 = vmatprep.subr.mxu0 0.0
  %235 = vmatpush1.msra.mxu0 0.0
  %236 = vmatprep.subr.mxu0 0.0
  %237 = vmatpush1.msra.mxu0 0.0
  %238 = vmatprep.subr.mxu0 0.0
  %239 = vmatpush1.msra.mxu0 0.0
  %240 = vmatprep.subr.mxu0 0.0
  %241 = vmatpush1.msra.mxu0 0.0
  %242 = vmatprep.subr.mxu0 0.0
  %243 = vmatpush1.msra.mxu0 0.0
  %244 = vmatprep.mubr.f32.mxu0 0.0
  %245 = vmatmul.mubr.f32.gmra.mrb[0].mxu0 %v165
  %v246 = vpop.f32.mrb[0].mxu0
  %v247 = vadd.f32 %v162, %v246
  %v248 = vpop.f32.mrb[0].mxu0
  %249 = vmatprep.mubr.f32.mxu0 0.0
  %250 = vmatmul.mubr.f32.gmra.mrb[0].mxu0 %v168
  %v251 = vpop.f32.mrb[0].mxu0
  %v252 = vadd.f32 %v162, %v251
  %v253 = vpop.f32.mrb[0].mxu0
  %254 = vmatprep.mubr.f32.mxu0 0.0
  %255 = vmatmul.mubr.f32.gmra.mrb[0].mxu0 %v171
  %v256 = vpop.f32.mrb[0].mxu0
  %v257 = vadd.f32 %v162, %v256
  %v258 = vpop.f32.mrb[0].mxu0
  %259 = vmatprep.mubr.f32.mxu0 0.0
  %260 = vmatmul.mubr.f32.gmra.mrb[0].mxu0 %v174
  %v261 = vpop.f32.mrb[0].mxu0
  %v262 = vadd.f32 %v162, %v261
  %v263 = vpop.f32.mrb[0].mxu0
  %264 = vdwg.mxu0
  %v265 = vxor.u32 %v247, 2147483648
  %v266 = vxor.u32 %v252, 2147483648
  %v267 = vxor.u32 %v257, 2147483648
  %v268 = vxor.u32 %v262, 2147483648
  %v269 = vmul.f32 %v265, 1.442695
  %v270 = vpow.pop %v269
  %v271 = vmul.f32 %v266, 1.442695
  %v272 = vpow.pop %v271
  %v273 = vmul.f32 %v267, 1.442695
  %v274 = vpow.pop %v273
  %v275 = vmul.f32 %v268, 1.442695
  %v276 = vpow.pop %v275
  %v277 = vadd.f32 %v270, 1.0
  %v278 = vadd.f32 %v272, 1.0
  %v279 = vadd.f32 %v274, 1.0
  %v280 = vadd.f32 %v276, 1.0
  %v281 = vrcp.pop %v277
  %v282 = vmul.f32 1.0, %v281
  %v283 = vrcp.pop %v278
  %v284 = vmul.f32 1.0, %v283
  %v285 = vrcp.pop %v279
  %v286 = vmul.f32 1.0, %v285
  %v287 = vrcp.pop %v280
  %v288 = vmul.f32 1.0, %v287
  %293 = vrot.lane.b32.xlu0 %v282, 96
  %v294 = vpop.permute.xlu0 %293
  %295 = vrot.lane.b32.xlu0 %v284, 96
  %v296 = vpop.permute.xlu0 %295
  %297 = vrot.lane.b32.xlu0 %v286, 96
  %v298 = vpop.permute.xlu0 %297
  %299 = vrot.lane.b32.xlu0 %v288, 96
  %v300 = vpop.permute.xlu0 %299
  %v306 = vsel %vm61, %v37, 0
  %v309 = vsel %vm61, %v38, 0
  %v312 = vsel %vm61, %v39, 0
  %v315 = vsel %vm61, %v40, 0
  %v318 = vsel %vm61, %v41, 0
  %v321 = vsel %vm61, %v42, 0
  %v324 = vsel %vm61, %v43, 0
  %v327 = vsel %vm61, %v44, 0
  %329 = vmatprep.subr.mxu0 0.0
  %330 = vmatpush1.msra.mxu0 %v294
  %331 = vmatprep.subr.mxu0 0.0
  %332 = vmatpush1.msra.mxu0 %v296
  %333 = vmatprep.subr.mxu0 0.0
  %334 = vmatpush1.msra.mxu0 %v298
  %335 = vmatprep.subr.mxu0 0.0
  %336 = vmatpush1.msra.mxu0 %v300
  %337 = vmatprep.subr.mxu0 0.0
  %338 = vmatpush1.msra.mxu0 0.0
  %339 = vmatprep.subr.mxu0 0.0
  %340 = vmatpush1.msra.mxu0 0.0
  %341 = vmatprep.subr.mxu0 0.0
  %342 = vmatpush1.msra.mxu0 0.0
  %343 = vmatprep.subr.mxu0 0.0
  %344 = vmatpush1.msra.mxu0 0.0
  %345 = vmatprep.subr.mxu0 0.0
  %346 = vmatpush1.msra.mxu0 0.0
  %347 = vmatprep.subr.mxu0 0.0
  %348 = vmatpush1.msra.mxu0 0.0
  %349 = vmatprep.subr.mxu0 0.0
  %350 = vmatpush1.msra.mxu0 0.0
  %351 = vmatprep.subr.mxu0 0.0
  %352 = vmatpush1.msra.mxu0 0.0
  %353 = vmatprep.subr.mxu0 0.0
  %354 = vmatpush1.msra.mxu0 0.0
  %355 = vmatprep.subr.mxu0 0.0
  %356 = vmatpush1.msra.mxu0 0.0
  %357 = vmatprep.subr.mxu0 0.0
  %358 = vmatpush1.msra.mxu0 0.0
  %359 = vmatprep.subr.mxu0 0.0
  %360 = vmatpush1.msra.mxu0 0.0
  %361 = vmatprep.subr.mxu0 0.0
  %362 = vmatpush1.msra.mxu0 0.0
  %363 = vmatprep.subr.mxu0 0.0
  %364 = vmatpush1.msra.mxu0 0.0
  %365 = vmatprep.subr.mxu0 0.0
  %366 = vmatpush1.msra.mxu0 0.0
  %367 = vmatprep.subr.mxu0 0.0
  %368 = vmatpush1.msra.mxu0 0.0
  %369 = vmatprep.subr.mxu0 0.0
  %370 = vmatpush1.msra.mxu0 0.0
  %371 = vmatprep.subr.mxu0 0.0
  %372 = vmatpush1.msra.mxu0 0.0
  %373 = vmatprep.subr.mxu0 0.0
  %374 = vmatpush1.msra.mxu0 0.0
  %375 = vmatprep.subr.mxu0 0.0
  %376 = vmatpush1.msra.mxu0 0.0
  %377 = vmatprep.subr.mxu0 0.0
  %378 = vmatpush1.msra.mxu0 0.0
  %379 = vmatprep.subr.mxu0 0.0
  %380 = vmatpush1.msra.mxu0 0.0
  %381 = vmatprep.subr.mxu0 0.0
  %382 = vmatpush1.msra.mxu0 0.0
  %383 = vmatprep.subr.mxu0 0.0
  %384 = vmatpush1.msra.mxu0 0.0
  %385 = vmatprep.subr.mxu0 0.0
  %386 = vmatpush1.msra.mxu0 0.0
  %387 = vmatprep.subr.mxu0 0.0
  %388 = vmatpush1.msra.mxu0 0.0
  %389 = vmatprep.subr.mxu0 0.0
  %390 = vmatpush1.msra.mxu0 0.0
  %391 = vmatprep.subr.mxu0 0.0
  %392 = vmatpush1.msra.mxu0 0.0
  %393 = vmatprep.mubr.f32.mxu0 0.0
  %394 = vmatmul.mubr.f32.gmra.mrb[0].mxu0 %v306
  %v395 = vpop.f32.mrb[0].mxu0
  %v396 = vadd.f32 0.0, %v395
  %v397 = vpop.f32.mrb[0].mxu0
  %398 = vmatprep.mubr.f32.mxu0 0.0
  %399 = vmatmul.mubr.f32.gmra.mrb[0].mxu0 %v309
  %v400 = vpop.f32.mrb[0].mxu0
  %v401 = vadd.f32 0.0, %v400
  %v402 = vpop.f32.mrb[0].mxu0
  %403 = vmatprep.mubr.f32.mxu0 0.0
  %404 = vmatmul.mubr.f32.gmra.mrb[0].mxu0 %v312
  %v405 = vpop.f32.mrb[0].mxu0
  %v406 = vadd.f32 0.0, %v405
  %v407 = vpop.f32.mrb[0].mxu0
  %408 = vmatprep.mubr.f32.mxu0 0.0
  %409 = vmatmul.mubr.f32.gmra.mrb[0].mxu0 %v315
  %v410 = vpop.f32.mrb[0].mxu0
  %v411 = vadd.f32 0.0, %v410
  %v412 = vpop.f32.mrb[0].mxu0
  %413 = vmatprep.mubr.f32.mxu0 0.0
  %414 = vmatmul.mubr.f32.gmra.mrb[0].mxu0 %v318
  %v415 = vpop.f32.mrb[0].mxu0
  %v416 = vadd.f32 0.0, %v415
  %v417 = vpop.f32.mrb[0].mxu0
  %418 = vmatprep.mubr.f32.mxu0 0.0
  %419 = vmatmul.mubr.f32.gmra.mrb[0].mxu0 %v321
  %v420 = vpop.f32.mrb[0].mxu0
  %v421 = vadd.f32 0.0, %v420
  %v422 = vpop.f32.mrb[0].mxu0
  %423 = vmatprep.mubr.f32.mxu0 0.0
  %424 = vmatmul.mubr.f32.gmra.mrb[0].mxu0 %v324
  %v425 = vpop.f32.mrb[0].mxu0
  %v426 = vadd.f32 0.0, %v425
  %v427 = vpop.f32.mrb[0].mxu0
  %428 = vmatprep.mubr.f32.mxu0 0.0
  %429 = vmatmul.mubr.f32.gmra.mrb[0].mxu0 %v327
  %v430 = vpop.f32.mrb[0].mxu0
  %v431 = vadd.f32 0.0, %v430
  %v432 = vpop.f32.mrb[0].mxu0
  %433 = vdwg.mxu0
  %v435 = vsel %vm61, %v29, 0
  %v438 = vsel %vm61, %v30, 0
  %v441 = vsel %vm61, %v31, 0
  %v444 = vsel %vm61, %v32, 0
  %v447 = vsel %vm61, %v33, 0
  %v450 = vsel %vm61, %v34, 0
  %v453 = vsel %vm61, %v35, 0
  %v456 = vsel %vm61, %v36, 0
  %458 = vmatprep.subr.mxu0 0.0
  %459 = vmatpush1.msra.mxu0 %v282
  %460 = vmatprep.subr.mxu0 0.0
  %461 = vmatpush1.msra.mxu0 %v284
  %462 = vmatprep.subr.mxu0 0.0
  %463 = vmatpush1.msra.mxu0 %v286
  %464 = vmatprep.subr.mxu0 0.0
  %465 = vmatpush1.msra.mxu0 %v288
  %466 = vmatprep.subr.mxu0 0.0
  %467 = vmatpush1.msra.mxu0 0.0
  %468 = vmatprep.subr.mxu0 0.0
  %469 = vmatpush1.msra.mxu0 0.0
  %470 = vmatprep.subr.mxu0 0.0
  %471 = vmatpush1.msra.mxu0 0.0
  %472 = vmatprep.subr.mxu0 0.0
  %473 = vmatpush1.msra.mxu0 0.0
  %474 = vmatprep.subr.mxu0 0.0
  %475 = vmatpush1.msra.mxu0 0.0
  %476 = vmatprep.subr.mxu0 0.0
  %477 = vmatpush1.msra.mxu0 0.0
  %478 = vmatprep.subr.mxu0 0.0
  %479 = vmatpush1.msra.mxu0 0.0
  %480 = vmatprep.subr.mxu0 0.0
  %481 = vmatpush1.msra.mxu0 0.0
  %482 = vmatprep.subr.mxu0 0.0
  %483 = vmatpush1.msra.mxu0 0.0
  %484 = vmatprep.subr.mxu0 0.0
  %485 = vmatpush1.msra.mxu0 0.0
  %486 = vmatprep.subr.mxu0 0.0
  %487 = vmatpush1.msra.mxu0 0.0
  %488 = vmatprep.subr.mxu0 0.0
  %489 = vmatpush1.msra.mxu0 0.0
  %490 = vmatprep.subr.mxu0 0.0
  %491 = vmatpush1.msra.mxu0 0.0
  %492 = vmatprep.subr.mxu0 0.0
  %493 = vmatpush1.msra.mxu0 0.0
  %494 = vmatprep.subr.mxu0 0.0
  %495 = vmatpush1.msra.mxu0 0.0
  %496 = vmatprep.subr.mxu0 0.0
  %497 = vmatpush1.msra.mxu0 0.0
  %498 = vmatprep.subr.mxu0 0.0
  %499 = vmatpush1.msra.mxu0 0.0
  %500 = vmatprep.subr.mxu0 0.0
  %501 = vmatpush1.msra.mxu0 0.0
  %502 = vmatprep.subr.mxu0 0.0
  %503 = vmatpush1.msra.mxu0 0.0
  %504 = vmatprep.subr.mxu0 0.0
  %505 = vmatpush1.msra.mxu0 0.0
  %506 = vmatprep.subr.mxu0 0.0
  %507 = vmatpush1.msra.mxu0 0.0
  %508 = vmatprep.subr.mxu0 0.0
  %509 = vmatpush1.msra.mxu0 0.0
  %510 = vmatprep.subr.mxu0 0.0
  %511 = vmatpush1.msra.mxu0 0.0
  %512 = vmatprep.subr.mxu0 0.0
  %513 = vmatpush1.msra.mxu0 0.0
  %514 = vmatprep.subr.mxu0 0.0
  %515 = vmatpush1.msra.mxu0 0.0
  %516 = vmatprep.subr.mxu0 0.0
  %517 = vmatpush1.msra.mxu0 0.0
  %518 = vmatprep.subr.mxu0 0.0
  %519 = vmatpush1.msra.mxu0 0.0
  %520 = vmatprep.subr.mxu0 0.0
  %521 = vmatpush1.msra.mxu0 0.0
  %522 = vmatprep.mubr.f32.mxu0 0.0
  %523 = vmatmul.mubr.f32.gmra.mrb[0].mxu0 %v435
  %v524 = vpop.f32.mrb[0].mxu0
  %v525 = vadd.f32 %v396, %v524
  %v526 = vpop.f32.mrb[0].mxu0
  %527 = vmatprep.mubr.f32.mxu0 0.0
  %528 = vmatmul.mubr.f32.gmra.mrb[0].mxu0 %v438
  %v529 = vpop.f32.mrb[0].mxu0
  %v530 = vadd.f32 %v401, %v529
  %v531 = vpop.f32.mrb[0].mxu0
  %532 = vmatprep.mubr.f32.mxu0 0.0
  %533 = vmatmul.mubr.f32.gmra.mrb[0].mxu0 %v441
  %v534 = vpop.f32.mrb[0].mxu0
  %v535 = vadd.f32 %v406, %v534
  %v536 = vpop.f32.mrb[0].mxu0
  %537 = vmatprep.mubr.f32.mxu0 0.0
  %538 = vmatmul.mubr.f32.gmra.mrb[0].mxu0 %v444
  %v539 = vpop.f32.mrb[0].mxu0
  %v540 = vadd.f32 %v411, %v539
  %v541 = vpop.f32.mrb[0].mxu0
  %542 = vmatprep.mubr.f32.mxu0 0.0
  %543 = vmatmul.mubr.f32.gmra.mrb[0].mxu0 %v447
  %v544 = vpop.f32.mrb[0].mxu0
  %v545 = vadd.f32 %v416, %v544
  %v546 = vpop.f32.mrb[0].mxu0
  %547 = vmatprep.mubr.f32.mxu0 0.0
  %548 = vmatmul.mubr.f32.gmra.mrb[0].mxu0 %v450
  %v549 = vpop.f32.mrb[0].mxu0
  %v550 = vadd.f32 %v421, %v549
  %v551 = vpop.f32.mrb[0].mxu0
  %552 = vmatprep.mubr.f32.mxu0 0.0
  %553 = vmatmul.mubr.f32.gmra.mrb[0].mxu0 %v453
  %v554 = vpop.f32.mrb[0].mxu0
  %v555 = vadd.f32 %v426, %v554
  %v556 = vpop.f32.mrb[0].mxu0
  %557 = vmatprep.mubr.f32.mxu0 0.0
  %558 = vmatmul.mubr.f32.gmra.mrb[0].mxu0 %v456
  %v559 = vpop.f32.mrb[0].mxu0
  %v560 = vadd.f32 %v431, %v559
  %v561 = vpop.f32.mrb[0].mxu0
  %562 = vdwg.mxu0
  %v563 = vmul.f32 %v525, %v21
  %v564 = vmul.f32 %v530, %v22
  %v565 = vmul.f32 %v535, %v23
  %v566 = vmul.f32 %v540, %v24
  %567 = vmatprep.subr.mxu0 0.0
  %568 = vmatpush1.msra.mxu0 %v563
  %569 = vmatprep.subr.mxu0 0.0
  %570 = vmatpush1.msra.mxu0 %v564
  %571 = vmatprep.subr.mxu0 0.0
  %572 = vmatpush1.msra.mxu0 %v565
  %573 = vmatprep.subr.mxu0 0.0
  %574 = vmatpush1.msra.mxu0 %v566
  %575 = vmatprep.subr.mxu0 0.0
  %576 = vmatpush1.msra.mxu0 0.0
  %577 = vmatprep.subr.mxu0 0.0
  %578 = vmatpush1.msra.mxu0 0.0
  %579 = vmatprep.subr.mxu0 0.0
  %580 = vmatpush1.msra.mxu0 0.0
  %581 = vmatprep.subr.mxu0 0.0
  %582 = vmatpush1.msra.mxu0 0.0
  %583 = vmatprep.subr.mxu0 0.0
  %584 = vmatpush1.msra.mxu0 0.0
  %585 = vmatprep.subr.mxu0 0.0
  %586 = vmatpush1.msra.mxu0 0.0
  %587 = vmatprep.subr.mxu0 0.0
  %588 = vmatpush1.msra.mxu0 0.0
  %589 = vmatprep.subr.mxu0 0.0
  %590 = vmatpush1.msra.mxu0 0.0
  %591 = vmatprep.subr.mxu0 0.0
  %592 = vmatpush1.msra.mxu0 0.0
  %593 = vmatprep.subr.mxu0 0.0
  %594 = vmatpush1.msra.mxu0 0.0
  %595 = vmatprep.subr.mxu0 0.0
  %596 = vmatpush1.msra.mxu0 0.0
  %597 = vmatprep.subr.mxu0 0.0
  %598 = vmatpush1.msra.mxu0 0.0
  %599 = vmatprep.subr.mxu0 0.0
  %600 = vmatpush1.msra.mxu0 0.0
  %601 = vmatprep.subr.mxu0 0.0
  %602 = vmatpush1.msra.mxu0 0.0
  %603 = vmatprep.subr.mxu0 0.0
  %604 = vmatpush1.msra.mxu0 0.0
  %605 = vmatprep.subr.mxu0 0.0
  %606 = vmatpush1.msra.mxu0 0.0
  %607 = vmatprep.subr.mxu0 0.0
  %608 = vmatpush1.msra.mxu0 0.0
  %609 = vmatprep.subr.mxu0 0.0
  %610 = vmatpush1.msra.mxu0 0.0
  %611 = vmatprep.subr.mxu0 0.0
  %612 = vmatpush1.msra.mxu0 0.0
  %613 = vmatprep.subr.mxu0 0.0
  %614 = vmatpush1.msra.mxu0 0.0
  %615 = vmatprep.subr.mxu0 0.0
  %616 = vmatpush1.msra.mxu0 0.0
  %617 = vmatprep.subr.mxu0 0.0
  %618 = vmatpush1.msra.mxu0 0.0
  %619 = vmatprep.subr.mxu0 0.0
  %620 = vmatpush1.msra.mxu0 0.0
  %621 = vmatprep.subr.mxu0 0.0
  %622 = vmatpush1.msra.mxu0 0.0
  %623 = vmatprep.subr.mxu0 0.0
  %624 = vmatpush1.msra.mxu0 0.0
  %625 = vmatprep.subr.mxu0 0.0
  %626 = vmatpush1.msra.mxu0 0.0
  %627 = vmatprep.subr.mxu0 0.0
  %628 = vmatpush1.msra.mxu0 0.0
  %629 = vmatprep.subr.mxu0 0.0
  %630 = vmatpush1.msra.mxu0 0.0
  %631 = vmatprep.mubr.f32.mxu0 0.0
  %632 = vmatmul.mubr.f32.gmra.mrb[0].mxu0 %v63
  %v633 = vpop.f32.mrb[0].mxu0
  %v634 = vadd.f32 0.0, %v633
  %v635 = vpop.f32.mrb[0].mxu0
  %636 = vmatprep.mubr.f32.mxu0 0.0
  %637 = vmatmul.mubr.f32.gmra.mrb[0].mxu0 %v66
  %v638 = vpop.f32.mrb[0].mxu0
  %v639 = vadd.f32 0.0, %v638
  %v640 = vpop.f32.mrb[0].mxu0
  %641 = vmatprep.mubr.f32.mxu0 0.0
  %642 = vmatmul.mubr.f32.gmra.mrb[0].mxu0 %v69
  %v643 = vpop.f32.mrb[0].mxu0
  %v644 = vadd.f32 0.0, %v643
  %v645 = vpop.f32.mrb[0].mxu0
  %646 = vmatprep.mubr.f32.mxu0 0.0
  %647 = vmatmul.mubr.f32.gmra.mrb[0].mxu0 %v72
  %v648 = vpop.f32.mrb[0].mxu0
  %v649 = vadd.f32 0.0, %v648
  %v650 = vpop.f32.mrb[0].mxu0
  %651 = vdwg.mxu0
  %v653 = vsel %vm61, %v634, 0
  %v656 = vsel %vm61, %v639, 0
  %v659 = vsel %vm61, %v644, 0
  %v662 = vsel %vm61, %v649, 0
  %664 = vmatprep.subr.mxu0 0.0
  %665 = vmatpush1.msra.mxu0 %v50
  %666 = vmatprep.subr.mxu0 0.0
  %667 = vmatpush1.msra.mxu0 %v51
  %668 = vmatprep.subr.mxu0 0.0
  %669 = vmatpush1.msra.mxu0 %v52
  %670 = vmatprep.subr.mxu0 0.0
  %671 = vmatpush1.msra.mxu0 %v53
  %672 = vmatprep.subr.mxu0 0.0
  %673 = vmatpush1.msra.mxu0 0.0
  %674 = vmatprep.subr.mxu0 0.0
  %675 = vmatpush1.msra.mxu0 0.0
  %676 = vmatprep.subr.mxu0 0.0
  %677 = vmatpush1.msra.mxu0 0.0
  %678 = vmatprep.subr.mxu0 0.0
  %679 = vmatpush1.msra.mxu0 0.0
  %680 = vmatprep.subr.mxu0 0.0
  %681 = vmatpush1.msra.mxu0 0.0
  %682 = vmatprep.subr.mxu0 0.0
  %683 = vmatpush1.msra.mxu0 0.0
  %684 = vmatprep.subr.mxu0 0.0
  %685 = vmatpush1.msra.mxu0 0.0
  %686 = vmatprep.subr.mxu0 0.0
  %687 = vmatpush1.msra.mxu0 0.0
  %688 = vmatprep.subr.mxu0 0.0
  %689 = vmatpush1.msra.mxu0 0.0
  %690 = vmatprep.subr.mxu0 0.0
  %691 = vmatpush1.msra.mxu0 0.0
  %692 = vmatprep.subr.mxu0 0.0
  %693 = vmatpush1.msra.mxu0 0.0
  %694 = vmatprep.subr.mxu0 0.0
  %695 = vmatpush1.msra.mxu0 0.0
  %696 = vmatprep.subr.mxu0 0.0
  %697 = vmatpush1.msra.mxu0 0.0
  %698 = vmatprep.subr.mxu0 0.0
  %699 = vmatpush1.msra.mxu0 0.0
  %700 = vmatprep.subr.mxu0 0.0
  %701 = vmatpush1.msra.mxu0 0.0
  %702 = vmatprep.subr.mxu0 0.0
  %703 = vmatpush1.msra.mxu0 0.0
  %704 = vmatprep.subr.mxu0 0.0
  %705 = vmatpush1.msra.mxu0 0.0
  %706 = vmatprep.subr.mxu0 0.0
  %707 = vmatpush1.msra.mxu0 0.0
  %708 = vmatprep.subr.mxu0 0.0
  %709 = vmatpush1.msra.mxu0 0.0
  %710 = vmatprep.subr.mxu0 0.0
  %711 = vmatpush1.msra.mxu0 0.0
  %712 = vmatprep.subr.mxu0 0.0
  %713 = vmatpush1.msra.mxu0 0.0
  %714 = vmatprep.subr.mxu0 0.0
  %715 = vmatpush1.msra.mxu0 0.0
  %716 = vmatprep.subr.mxu0 0.0
  %717 = vmatpush1.msra.mxu0 0.0
  %718 = vmatprep.subr.mxu0 0.0
  %719 = vmatpush1.msra.mxu0 0.0
  %720 = vmatprep.subr.mxu0 0.0
  %721 = vmatpush1.msra.mxu0 0.0
  %722 = vmatprep.subr.mxu0 0.0
  %723 = vmatpush1.msra.mxu0 0.0
  %724 = vmatprep.subr.mxu0 0.0
  %725 = vmatpush1.msra.mxu0 0.0
  %726 = vmatprep.subr.mxu0 0.0
  %727 = vmatpush1.msra.mxu0 0.0
  %728 = vmatprep.mubr.f32.mxu0 0.0
  %729 = vmatmul.mubr.f32.gmra.mrb[0].mxu0 %v653
  %v730 = vpop.f32.mrb[0].mxu0
  %v731 = vadd.f32 0.0, %v730
  %v732 = vpop.f32.mrb[0].mxu0
  %733 = vmatprep.mubr.f32.mxu0 0.0
  %734 = vmatmul.mubr.f32.gmra.mrb[0].mxu0 %v656
  %v735 = vpop.f32.mrb[0].mxu0
  %v736 = vadd.f32 0.0, %v735
  %v737 = vpop.f32.mrb[0].mxu0
  %738 = vmatprep.mubr.f32.mxu0 0.0
  %739 = vmatmul.mubr.f32.gmra.mrb[0].mxu0 %v659
  %v740 = vpop.f32.mrb[0].mxu0
  %v741 = vadd.f32 0.0, %v740
  %v742 = vpop.f32.mrb[0].mxu0
  %743 = vmatprep.mubr.f32.mxu0 0.0
  %744 = vmatmul.mubr.f32.gmra.mrb[0].mxu0 %v662
  %v745 = vpop.f32.mrb[0].mxu0
  %v746 = vadd.f32 0.0, %v745
  %v747 = vpop.f32.mrb[0].mxu0
  %748 = vdwg.mxu0
  %v750 = vsel %vm176, %v49, 0
  %752 = vmatprep.subr.mxu0 0.0
  %753 = vmatpush1.msra.mxu0 %v45
  %754 = vmatprep.subr.mxu0 0.0
  %755 = vmatpush1.msra.mxu0 %v46
  %756 = vmatprep.subr.mxu0 0.0
  %757 = vmatpush1.msra.mxu0 %v47
  %758 = vmatprep.subr.mxu0 0.0
  %759 = vmatpush1.msra.mxu0 %v48
  %760 = vmatprep.subr.mxu0 0.0
  %761 = vmatpush1.msra.mxu0 %v750
  %762 = vmatprep.subr.mxu0 0.0
  %763 = vmatpush1.msra.mxu0 0.0
  %764 = vmatprep.subr.mxu0 0.0
  %765 = vmatpush1.msra.mxu0 0.0
  %766 = vmatprep.subr.mxu0 0.0
  %767 = vmatpush1.msra.mxu0 0.0
  %768 = vmatprep.subr.mxu0 0.0
  %769 = vmatpush1.msra.mxu0 0.0
  %770 = vmatprep.subr.mxu0 0.0
  %771 = vmatpush1.msra.mxu0 0.0
  %772 = vmatprep.subr.mxu0 0.0
  %773 = vmatpush1.msra.mxu0 0.0
  %774 = vmatprep.subr.mxu0 0.0
  %775 = vmatpush1.msra.mxu0 0.0
  %776 = vmatprep.subr.mxu0 0.0
  %777 = vmatpush1.msra.mxu0 0.0
  %778 = vmatprep.subr.mxu0 0.0
  %779 = vmatpush1.msra.mxu0 0.0
  %780 = vmatprep.subr.mxu0 0.0
  %781 = vmatpush1.msra.mxu0 0.0
  %782 = vmatprep.subr.mxu0 0.0
  %783 = vmatpush1.msra.mxu0 0.0
  %784 = vmatprep.subr.mxu0 0.0
  %785 = vmatpush1.msra.mxu0 0.0
  %786 = vmatprep.subr.mxu0 0.0
  %787 = vmatpush1.msra.mxu0 0.0
  %788 = vmatprep.subr.mxu0 0.0
  %789 = vmatpush1.msra.mxu0 0.0
  %790 = vmatprep.subr.mxu0 0.0
  %791 = vmatpush1.msra.mxu0 0.0
  %792 = vmatprep.subr.mxu0 0.0
  %793 = vmatpush1.msra.mxu0 0.0
  %794 = vmatprep.subr.mxu0 0.0
  %795 = vmatpush1.msra.mxu0 0.0
  %796 = vmatprep.subr.mxu0 0.0
  %797 = vmatpush1.msra.mxu0 0.0
  %798 = vmatprep.subr.mxu0 0.0
  %799 = vmatpush1.msra.mxu0 0.0
  %800 = vmatprep.subr.mxu0 0.0
  %801 = vmatpush1.msra.mxu0 0.0
  %802 = vmatprep.subr.mxu0 0.0
  %803 = vmatpush1.msra.mxu0 0.0
  %804 = vmatprep.subr.mxu0 0.0
  %805 = vmatpush1.msra.mxu0 0.0
  %806 = vmatprep.subr.mxu0 0.0
  %807 = vmatpush1.msra.mxu0 0.0
  %808 = vmatprep.subr.mxu0 0.0
  %809 = vmatpush1.msra.mxu0 0.0
  %810 = vmatprep.subr.mxu0 0.0
  %811 = vmatpush1.msra.mxu0 0.0
  %812 = vmatprep.subr.mxu0 0.0
  %813 = vmatpush1.msra.mxu0 0.0
  %814 = vmatprep.subr.mxu0 0.0
  %815 = vmatpush1.msra.mxu0 0.0
  %816 = vmatprep.mubr.f32.mxu0 0.0
  %817 = vmatmul.mubr.f32.gmra.mrb[0].mxu0 %v165
  %v818 = vpop.f32.mrb[0].mxu0
  %v819 = vadd.f32 %v731, %v818
  %v820 = vpop.f32.mrb[0].mxu0
  %821 = vmatprep.mubr.f32.mxu0 0.0
  %822 = vmatmul.mubr.f32.gmra.mrb[0].mxu0 %v168
  %v823 = vpop.f32.mrb[0].mxu0
  %v824 = vadd.f32 %v736, %v823
  %v825 = vpop.f32.mrb[0].mxu0
  %826 = vmatprep.mubr.f32.mxu0 0.0
  %827 = vmatmul.mubr.f32.gmra.mrb[0].mxu0 %v171
  %v828 = vpop.f32.mrb[0].mxu0
  %v829 = vadd.f32 %v741, %v828
  %v830 = vpop.f32.mrb[0].mxu0
  %831 = vmatprep.mubr.f32.mxu0 0.0
  %832 = vmatmul.mubr.f32.gmra.mrb[0].mxu0 %v174
  %v833 = vpop.f32.mrb[0].mxu0
  %v834 = vadd.f32 %v746, %v833
  %v835 = vpop.f32.mrb[0].mxu0
  %836 = vdwg.mxu0
  %v837 = vlaneseq
  %v838 = vshrl.u32 %v837, 7
  %v839 = vsub.s32 0, %v838
  %v840 = vrot.slane %v54, %v839
  %v841 = vadd.f32 %v819, %v840
  %v842 = vadd.f32 %v824, %v840
  %v843 = vadd.f32 %v829, %v840
  %v844 = vadd.f32 %v834, %v840
  %v845 = vtanh.pop %v841
  %v846 = vtanh.pop %v842
  %v847 = vtanh.pop %v843
  %v848 = vtanh.pop %v844
  %v849 = vmul.f32 %v545, %v21
  %v850 = vmul.f32 %v550, %v22
  %v851 = vmul.f32 %v555, %v23
  %v852 = vmul.f32 %v560, %v24
  %v853 = vsub.f32 1.0, %v545
  %v854 = vsub.f32 1.0, %v550
  %v855 = vsub.f32 1.0, %v555
  %v856 = vsub.f32 1.0, %v560
  %v857 = vmul.f32 %v853, %v845
  %v858 = vmul.f32 %v854, %v846
  %v859 = vmul.f32 %v855, %v847
  %v860 = vmul.f32 %v856, %v848
  %v861 = vadd.f32 %v849, %v857
  %v862 = vadd.f32 %v850, %v858
  %v863 = vadd.f32 %v851, %v859
  %v864 = vadd.f32 %v852, %v860
  %865 = vst.msk [vmem:[%s4] sm:$0xff] %vm61, %v861
  %866 = vst.msk [vmem:[%s4 + $0x8] sm:$0xff] %vm61, %v862
  %867 = vst.msk [vmem:[%s4 + $0x10] sm:$0xff] %vm61, %v863
  %868 = vst.msk [vmem:[%s4 + $0x18] sm:$0xff] %vm61, %v864
  // Predicated region
  $region18: #{tgcn_cell_forward.1} parent=0 // pred_check
    _
  $region19: #{tgcn_cell_forward.1} parent=0 // pred_check_branch
    %870 = sbr.rel (0) target = $region21
  $region20: #{tgcn_cell_forward.1} parent=0 // pred_region
    _
  $region21: #{tgcn_cell_forward.1} parent=0 // pred_fallthru
    _
  // Predicated region
  $region22: #{tgcn_cell_forward.1} parent=0 // pred_check
    _
  $region23: #{tgcn_cell_forward.1} parent=0 // pred_check_branch
    %872 = sbr.rel (0) target = $region25
  $region24: #{tgcn_cell_forward.1} parent=0 // pred_region
    _
  $region25: #{tgcn_cell_forward.1} parent=0 // pred_fallthru
    _

</llo_original>
